<compile_context>
chip_gen: v7x
topology: tpu7x:2x2x1
jax: 0.10.0
libtpu: 0.0.40
codegen_flags: <defaults>
</compile_context>

<pallas_src>
import jax
import jax.numpy as jnp
from jax.experimental import pallas as pl
from jax.experimental.pallas import tpu as pltpu

EPS = 1e-5        # PyTorch BatchNorm2d default
MXU_MIN_C = 8     # below this, the 1x1 conv stays on the VPU


def _vmem_capacity_bytes():
    """Per-core VMEM capacity (v5e/v6e: 128 MiB, v7x: 64 MiB); conservative fallback."""
    try:
        cap = int(pltpu.get_tpu_info().vmem_capacity_bytes)
        if cap > 0:
            return cap
    except Exception:
        pass
    return 64 << 20


# ----------------------------------------------------------------------------
# Fast path: whole problem resident in VMEM, single kernel invocation.
# ----------------------------------------------------------------------------
def _make_fast_kernel(N, C, inv_count):
    use_mxu = C >= MXU_MIN_C

    def conv1x1(inp, w):
        # inp: (N, Cin, L), w: (Cout, Cin) -> (N, Cout, L)
        if use_mxu:
            wb = jnp.broadcast_to(w[None], (N,) + w.shape)
            return jax.lax.dot_general(
                wb, inp,
                dimension_numbers=(((2,), (1,)), ((0,), (0,))),
                preferred_element_type=jnp.float32)
        # Tiny-C: VPU broadcast multiply-add, (1,C,1) weight column x (N,1,L) row.
        acc = w[:, 0:1][None, :, :] * inp[:, 0:1, :]
        for k in range(1, C):
            acc = acc + w[:, k:k + 1][None, :, :] * inp[:, k:k + 1, :]
        return acc

    def kernel(x_ref, wts_ref, vecs_ref, o_ref):
        x = x_ref[...]                      # (N, C, HW): C on sublanes, pixels on lanes
        w1 = wts_ref[0]
        w2 = wts_ref[1]
        g1 = vecs_ref[0][None]              # (1, C, 1)
        be1 = vecs_ref[1][None]
        g2 = vecs_ref[2][None]
        be2 = vecs_ref[3][None]

        def bn_train(h, g, be):
            # Centered moments (no cancellation); lane (XLU) then batch reduction.
            s = jnp.sum(jnp.sum(h, axis=2, keepdims=True), axis=0, keepdims=True)
            m = s * inv_count
            d = h - m
            v = jnp.sum(jnp.sum(d * d, axis=2, keepdims=True), axis=0, keepdims=True) * inv_count
            sc = g * jax.lax.rsqrt(v + EPS)          # gamma folded into the scale (EUP)
            return h * sc + (be - m * sc)            # one FMA per element

        h1 = conv1x1(x, w1)
        a = jnp.maximum(bn_train(h1, g1, be1), 0.0)
        h2 = conv1x1(a, w2)
        o_ref[...] = bn_train(h2, g2, be2) + x       # BN2 + residual

    return kernel


def _fast_call(x3, wts, vecs, N, C, HW, inv_count, cap, needed_bytes):
    vmem_limit = int(min(cap, max(needed_bytes + (4 << 20), 32 << 20)))
    return pl.pallas_call(
        _make_fast_kernel(N, C, inv_count),
        out_shape=jax.ShapeDtypeStruct((N, C, HW), jnp.float32),
        in_specs=[pl.BlockSpec(memory_space=pltpu.MemorySpace.VMEM)] * 3,
        out_specs=pl.BlockSpec(memory_space=pltpu.MemorySpace.VMEM),
        compiler_params=pltpu.CompilerParams(vmem_limit_bytes=vmem_limit),
    )(x3, wts, vecs)


# ----------------------------------------------------------------------------
# Streaming path: 3-phase (phase, batch, pixel-tile) grid with BN stats in scratch.
#   phase 0: conv1, accumulate BN1 sum / sum-of-squares
#   phase 1: recompute conv1, apply BN1+ReLU, conv2, accumulate BN2 stats
#   phase 2: recompute, apply BN2, add skip, write output
# ----------------------------------------------------------------------------
def _make_tiled_kernel(C, inv_count):
    use_mxu = C >= MXU_MIN_C

    def conv1x1(inp, w):
        # inp: (C, L), w: (Cout, Cin) -> (Cout, L)
        if use_mxu:
            return jnp.dot(w, inp, preferred_element_type=jnp.float32)
        acc = w[:, 0:1] * inp[0:1, :]
        for k in range(1, C):
            acc = acc + w[:, k:k + 1] * inp[k:k + 1, :]
        return acc

    def kernel(x_ref, wts_ref, vecs_ref, o_ref,
               s1, q1, s2, q2, sc1_r, of1_r, sc2_r, of2_r):
        p = pl.program_id(0)   # phase
        n = pl.program_id(1)   # batch image
        t = pl.program_id(2)   # pixel tile

        @pl.when((p == 0) & (n == 0) & (t == 0))
        def _init():
            s1[...] = jnp.zeros_like(s1)
            q1[...] = jnp.zeros_like(q1)
            s2[...] = jnp.zeros_like(s2)
            q2[...] = jnp.zeros_like(q2)

        x = x_ref[0]            # (C, L)
        w1 = wts_ref[0]
        w2 = wts_ref[1]
        g1 = vecs_ref[0]        # (C, 1) each
        be1 = vecs_ref[1]
        g2 = vecs_ref[2]
        be2 = vecs_ref[3]

        h1 = conv1x1(x, w1)     # needed in every phase

        @pl.when(p == 0)
        def _bn1_stats():
            s1[...] += jnp.sum(h1, axis=1, keepdims=True)       # lane (XLU) reduction
            q1[...] += jnp.sum(h1 * h1, axis=1, keepdims=True)

        # BN scale/offset derived once per phase (hoisted out of the tile loop).
        @pl.when((p == 1) & (n == 0) & (t == 0))
        def _derive_bn1():
            m1 = s1[...] * inv_count
            v1 = jnp.maximum(q1[...] * inv_count - m1 * m1, 0.0)   # clamp: f32 cancellation
            sc1_r[...] = g1 * jax.lax.rsqrt(v1 + EPS)
            of1_r[...] = be1 - m1 * sc1_r[...]

        @pl.when((p == 2) & (n == 0) & (t == 0))
        def _derive_bn2():
            m2 = s2[...] * inv_count
            v2 = jnp.maximum(q2[...] * inv_count - m2 * m2, 0.0)
            sc2_r[...] = g2 * jax.lax.rsqrt(v2 + EPS)
            of2_r[...] = be2 - m2 * sc2_r[...]

        @pl.when(p > 0)
        def _phases_1_2():
            a = jnp.maximum(h1 * sc1_r[...] + of1_r[...], 0.0)   # BN1 + ReLU
            h2 = conv1x1(a, w2)

            @pl.when(p == 1)
            def _bn2_stats():
                s2[...] += jnp.sum(h2, axis=1, keepdims=True)
                q2[...] += jnp.sum(h2 * h2, axis=1, keepdims=True)

            @pl.when(p == 2)
            def _finalize():
                o_ref[0] = h2 * sc2_r[...] + of2_r[...] + x      # BN2 + residual

    return kernel


def _pick_lane_tile(hw, l_cap):
    """Largest multiple-of-128 tile dividing HW and fitting the VMEM cap."""
    cand = max((l_cap // 128) * 128, 0)
    while cand >= 128:
        if hw % cand == 0:
            return cand
        cand -= 128
    # Fallback: largest divisor of HW that fits the cap (keeps stat sums exact;
    # stores may be lane-masked).  TODO(synk): pad + lane-mask instead.
    d = max(min(hw, l_cap), 1)
    while hw % d != 0:
        d -= 1
    return d


def _tiled_call(x3, wts, vecs, N, C, HW, inv_count, cap):
    block_budget = max(cap // 4, 4 << 20)           # double-buffered in + out blocks
    l_cap = max(block_budget // (16 * C), 128)
    L = _pick_lane_tile(HW, l_cap)
    T = HW // L
    block_bytes = 4 * C * L
    vmem_limit = int(min(cap, max(32 << 20, 4 * block_bytes + (8 << 20))))

    def out_map(p, n, t):
        # Park on block (0,0,0) until the write phase so the statistics phases
        # never push (garbage) output blocks back to HBM.
        sel = p == 2
        return (jnp.where(sel, n, 0), 0, jnp.where(sel, t, 0))

    return pl.pallas_call(
        _make_tiled_kernel(C, inv_count),
        out_shape=jax.ShapeDtypeStruct((N, C, HW), jnp.float32),
        grid_spec=pltpu.PrefetchScalarGridSpec(
            num_scalar_prefetch=0,
            grid=(3, N, T),   # (phase, batch image, pixel tile); phase slowest
            in_specs=[
                pl.BlockSpec((1, C, L), lambda p, n, t: (n, 0, t)),   # x tile
                pl.BlockSpec((2, C, C), lambda p, n, t: (0, 0, 0)),   # conv weights (resident)
                pl.BlockSpec((4, C, 1), lambda p, n, t: (0, 0, 0)),   # BN gamma/beta (resident)
            ],
            out_specs=pl.BlockSpec((1, C, L), out_map),
            scratch_shapes=[pltpu.VMEM((C, 1), jnp.float32) for _ in range(8)],
        ),
        compiler_params=pltpu.CompilerParams(
            # Every grid axis feeds the sequential BN-statistics reduction held
            # in per-core scratch, so no axis may be sharded across TensorCores.
            dimension_semantics=("arbitrary", "arbitrary", "arbitrary"),
            vmem_limit_bytes=vmem_limit,
        ),
    )(x3, wts, vecs)


# ----------------------------------------------------------------------------
# Public wrapper
# ----------------------------------------------------------------------------
def resnet_block(x_nchw, w1, b1, g1, be1, w2, b2, g2, be2, *, force_tiled=False):
    # b1/b2 are accepted for interface parity but provably cancel in
    # training-mode BatchNorm, so they are not sent to the kernels.
    del b1, b2
    N, C, H, W = x_nchw.shape
    HW = H * W

    # Free reshapes only -- no NCHW<->NHWC transposes on either side.
    x3 = x_nchw.reshape(N, C, HW).astype(jnp.float32)
    wts = jnp.stack([w1.reshape(C, C), w2.reshape(C, C)]).astype(jnp.float32)        # (2, C, C)
    vecs = jnp.stack([g1, be1, g2, be2]).astype(jnp.float32).reshape(4, C, 1)        # (4, C, 1)

    inv_count = 1.0 / float(N * HW)
    cap = _vmem_capacity_bytes()

    slab_bytes = 4 * N * C * HW
    param_bytes = 4 * (2 * C * C + 4 * C)
    fast_needed = 6 * slab_bytes + param_bytes + (1 << 20)   # x, out, h1, a, h2 + slack

    if (not force_tiled) and fast_needed <= (cap * 5) // 8:
        out3 = _fast_call(x3, wts, vecs, N, C, HW, inv_count, cap, fast_needed)
    else:
        out3 = _tiled_call(x3, wts, vecs, N, C, HW, inv_count, cap)

    return out3.reshape(N, C, H, W)


def ref_forward(x, w1, b1, g1, be1, w2, b2, g2, be2):
    """Pure-JAX reference mirroring the PyTorch forward (NCHW, training-mode BN)."""
    def conv1x1(h, w, b):
        return jnp.einsum('nchw,oc->nohw', h, w[:, :, 0, 0]) + b[None, :, None, None]

    def bn(h, g, be):
        m = jnp.mean(h, axis=(0, 2, 3), keepdims=True)
        v = jnp.mean((h - m) ** 2, axis=(0, 2, 3), keepdims=True)
        return (h - m) / jnp.sqrt(v + EPS) * g[None, :, None, None] + be[None, :, None, None]

    skip = x
    h = jnp.maximum(bn(conv1x1(x, w1, b1), g1, be1), 0.0)
    h = bn(conv1x1(h, w2, b2), g2, be2)
    return h + skip


if __name__ == "__main__":
    # Shapes consistent with the module: batch=2, channels=4, spatial=16,
    # kernel_size=1 (required for the residual add to be shape-valid).
    N, C, H, W = 2, 4, 16, 16
    key = jax.random.PRNGKey(0)
    kx, k1, k2, k3, k4, k5, k6, k7, k8 = jax.random.split(key, 9)

    x = jax.random.normal(kx, (N, C, H, W), dtype=jnp.float32)

    w1 = 0.2 * jax.random.normal(k1, (C, C, 1, 1), dtype=jnp.float32)   # conv1.weight
    b1 = 0.1 * jax.random.normal(k2, (C,), dtype=jnp.float32)           # conv1.bias
    w2 = 0.2 * jax.random.normal(k3, (C, C, 1, 1), dtype=jnp.float32)   # conv2.weight
    b2 = 0.1 * jax.random.normal(k4, (C,), dtype=jnp.float32)           # conv2.bias
    g1 = 1.0 + 0.1 * jax.random.normal(k5, (C,), dtype=jnp.float32)     # bn1.weight
    be1 = 0.1 * jax.random.normal(k6, (C,), dtype=jnp.float32)          # bn1.bias
    g2 = 1.0 + 0.1 * jax.random.normal(k7, (C,), dtype=jnp.float32)     # bn2.weight
    be2 = 0.1 * jax.random.normal(k8, (C,), dtype=jnp.float32)          # bn2.bias

    ref = ref_forward(x, w1, b1, g1, be1, w2, b2, g2, be2)

    run = jax.jit(resnet_block, static_argnames=("force_tiled",))

    # 1) VMEM-resident fast path (the one this shape actually takes).
    out_fast = jax.block_until_ready(run(x, w1, b1, g1, be1, w2, b2, g2, be2))
    assert out_fast.shape == (N, C, H, W)
    assert jnp.allclose(out_fast, ref, rtol=1e-3, atol=1e-3), "fast path mismatch vs JAX reference"

    # 2) Streaming 3-phase path (forced, to validate the large-shape code path).
    out_tiled = jax.block_until_ready(
        run(x, w1, b1, g1, be1, w2, b2, g2, be2, force_tiled=True))
    assert jnp.allclose(out_tiled, ref, rtol=1e-3, atol=1e-3), "streaming path mismatch vs JAX reference"

    # TODO(synk): general kernel_size>1 conv is not implemented because the
    # module's residual add is only shape-valid for kernel_size=1 (padding=0).
    print("KERNEL_OK")
</pallas_src>

<mosaic_0001>
module attributes {stable_mosaic.version = 11 : i64} {
  func.func @kernel(%arg0: memref<2x4x256xf32, #tpu.memory_space<vmem>>, %arg1: memref<2x4x4xf32, #tpu.memory_space<vmem>>, %arg2: memref<4x4x1xf32, #tpu.memory_space<vmem>>, %arg3: memref<2x4x256xf32, #tpu.memory_space<vmem>>) attributes {dimension_semantics = [], scalar_prefetch = 0 : i64, scratch_operands = 0 : i64, tpu.core_type = #tpu.core_type<tc>} {
    %c0 = arith.constant 0 : index
    %c0_0 = arith.constant 0 : index
    %c0_1 = arith.constant 0 : index
    %0 = vector.load %arg0[%c0, %c0_0, %c0_1] : memref<2x4x256xf32, #tpu.memory_space<vmem>>, vector<2x4x256xf32>
    %c0_2 = arith.constant 0 : index
    %c0_3 = arith.constant 0 : index
    %c0_4 = arith.constant 0 : index
    %1 = vector.load %arg1[%c0_2, %c0_3, %c0_4] : memref<2x4x4xf32, #tpu.memory_space<vmem>>, vector<1x4x4xf32>
    %2 = vector.shape_cast %1 : vector<1x4x4xf32> to vector<4x4xf32>
    %c1 = arith.constant 1 : index
    %c0_5 = arith.constant 0 : index
    %c0_6 = arith.constant 0 : index
    %3 = vector.load %arg1[%c1, %c0_5, %c0_6] : memref<2x4x4xf32, #tpu.memory_space<vmem>>, vector<1x4x4xf32>
    %4 = vector.shape_cast %3 : vector<1x4x4xf32> to vector<4x4xf32>
    %c0_7 = arith.constant 0 : index
    %c0_8 = arith.constant 0 : index
    %c0_9 = arith.constant 0 : index
    %5 = vector.load %arg2[%c0_7, %c0_8, %c0_9] : memref<4x4x1xf32, #tpu.memory_space<vmem>>, vector<1x4x1xf32>
    %6 = vector.shape_cast %5 : vector<1x4x1xf32> to vector<4x1xf32>
    %7 = vector.shape_cast %6 : vector<4x1xf32> to vector<1x4x1xf32>
    %c1_10 = arith.constant 1 : index
    %c0_11 = arith.constant 0 : index
    %c0_12 = arith.constant 0 : index
    %8 = vector.load %arg2[%c1_10, %c0_11, %c0_12] : memref<4x4x1xf32, #tpu.memory_space<vmem>>, vector<1x4x1xf32>
    %9 = vector.shape_cast %8 : vector<1x4x1xf32> to vector<4x1xf32>
    %10 = vector.shape_cast %9 : vector<4x1xf32> to vector<1x4x1xf32>
    %c2 = arith.constant 2 : index
    %c0_13 = arith.constant 0 : index
    %c0_14 = arith.constant 0 : index
    %11 = vector.load %arg2[%c2, %c0_13, %c0_14] : memref<4x4x1xf32, #tpu.memory_space<vmem>>, vector<1x4x1xf32>
    %12 = vector.shape_cast %11 : vector<1x4x1xf32> to vector<4x1xf32>
    %13 = vector.shape_cast %12 : vector<4x1xf32> to vector<1x4x1xf32>
    %c3 = arith.constant 3 : index
    %c0_15 = arith.constant 0 : index
    %c0_16 = arith.constant 0 : index
    %14 = vector.load %arg2[%c3, %c0_15, %c0_16] : memref<4x4x1xf32, #tpu.memory_space<vmem>>, vector<1x4x1xf32>
    %15 = vector.shape_cast %14 : vector<1x4x1xf32> to vector<4x1xf32>
    %16 = vector.shape_cast %15 : vector<4x1xf32> to vector<1x4x1xf32>
    %17 = vector.extract_strided_slice %2 {offsets = [0, 0], sizes = [4, 1], strides = [1, 1]} : vector<4x4xf32> to vector<4x1xf32>
    %18 = vector.shape_cast %17 : vector<4x1xf32> to vector<1x4x1xf32>
    %19 = vector.extract_strided_slice %0 {offsets = [0, 0, 0], sizes = [2, 1, 256], strides = [1, 1, 1]} : vector<2x4x256xf32> to vector<2x1x256xf32>
    %20 = vector.broadcast %18 : vector<1x4x1xf32> to vector<2x4x256xf32>
    %21 = vector.broadcast %19 : vector<2x1x256xf32> to vector<2x4x256xf32>
    %22 = arith.mulf %20, %21 : vector<2x4x256xf32>
    %23 = vector.extract_strided_slice %2 {offsets = [0, 1], sizes = [4, 1], strides = [1, 1]} : vector<4x4xf32> to vector<4x1xf32>
    %24 = vector.shape_cast %23 : vector<4x1xf32> to vector<1x4x1xf32>
    %25 = vector.extract_strided_slice %0 {offsets = [0, 1, 0], sizes = [2, 1, 256], strides = [1, 1, 1]} : vector<2x4x256xf32> to vector<2x1x256xf32>
    %26 = vector.broadcast %24 : vector<1x4x1xf32> to vector<2x4x256xf32>
    %27 = vector.broadcast %25 : vector<2x1x256xf32> to vector<2x4x256xf32>
    %28 = arith.mulf %26, %27 : vector<2x4x256xf32>
    %29 = arith.addf %22, %28 : vector<2x4x256xf32>
    %30 = vector.extract_strided_slice %2 {offsets = [0, 2], sizes = [4, 1], strides = [1, 1]} : vector<4x4xf32> to vector<4x1xf32>
    %31 = vector.shape_cast %30 : vector<4x1xf32> to vector<1x4x1xf32>
    %32 = vector.extract_strided_slice %0 {offsets = [0, 2, 0], sizes = [2, 1, 256], strides = [1, 1, 1]} : vector<2x4x256xf32> to vector<2x1x256xf32>
    %33 = vector.broadcast %31 : vector<1x4x1xf32> to vector<2x4x256xf32>
    %34 = vector.broadcast %32 : vector<2x1x256xf32> to vector<2x4x256xf32>
    %35 = arith.mulf %33, %34 : vector<2x4x256xf32>
    %36 = arith.addf %29, %35 : vector<2x4x256xf32>
    %37 = vector.extract_strided_slice %2 {offsets = [0, 3], sizes = [4, 1], strides = [1, 1]} : vector<4x4xf32> to vector<4x1xf32>
    %38 = vector.shape_cast %37 : vector<4x1xf32> to vector<1x4x1xf32>
    %39 = vector.extract_strided_slice %0 {offsets = [0, 3, 0], sizes = [2, 1, 256], strides = [1, 1, 1]} : vector<2x4x256xf32> to vector<2x1x256xf32>
    %40 = vector.broadcast %38 : vector<1x4x1xf32> to vector<2x4x256xf32>
    %41 = vector.broadcast %39 : vector<2x1x256xf32> to vector<2x4x256xf32>
    %42 = arith.mulf %40, %41 : vector<2x4x256xf32>
    %43 = arith.addf %36, %42 : vector<2x4x256xf32>
    %cst = arith.constant dense<0.000000e+00> : vector<2x4xf32>
    %44 = vector.multi_reduction <add>, %43, %cst [2] : vector<2x4x256xf32> to vector<2x4xf32>
    %45 = vector.shape_cast %44 : vector<2x4xf32> to vector<2x4x1xf32>
    %cst_17 = arith.constant dense<0.000000e+00> : vector<4x1xf32>
    %46 = vector.multi_reduction <add>, %45, %cst_17 [0] : vector<2x4x1xf32> to vector<4x1xf32>
    %47 = vector.shape_cast %46 : vector<4x1xf32> to vector<1x4x1xf32>
    %cst_18 = arith.constant 0.001953125 : f32
    %48 = vector.broadcast %cst_18 : f32 to vector<1x4x1xf32>
    %49 = arith.mulf %47, %48 : vector<1x4x1xf32>
    %50 = vector.broadcast %49 : vector<1x4x1xf32> to vector<2x4x256xf32>
    %51 = arith.subf %43, %50 : vector<2x4x256xf32>
    %52 = arith.mulf %51, %51 : vector<2x4x256xf32>
    %cst_19 = arith.constant dense<0.000000e+00> : vector<2x4xf32>
    %53 = vector.multi_reduction <add>, %52, %cst_19 [2] : vector<2x4x256xf32> to vector<2x4xf32>
    %54 = vector.shape_cast %53 : vector<2x4xf32> to vector<2x4x1xf32>
    %cst_20 = arith.constant dense<0.000000e+00> : vector<4x1xf32>
    %55 = vector.multi_reduction <add>, %54, %cst_20 [0] : vector<2x4x1xf32> to vector<4x1xf32>
    %56 = vector.shape_cast %55 : vector<4x1xf32> to vector<1x4x1xf32>
    %cst_21 = arith.constant 0.001953125 : f32
    %57 = vector.broadcast %cst_21 : f32 to vector<1x4x1xf32>
    %58 = arith.mulf %56, %57 : vector<1x4x1xf32>
    %cst_22 = arith.constant 9.99999974E-6 : f32
    %59 = vector.broadcast %cst_22 : f32 to vector<1x4x1xf32>
    %60 = arith.addf %58, %59 : vector<1x4x1xf32>
    %61 = math.rsqrt %60 : vector<1x4x1xf32>
    %62 = arith.mulf %7, %61 : vector<1x4x1xf32>
    %63 = vector.broadcast %62 : vector<1x4x1xf32> to vector<2x4x256xf32>
    %64 = arith.mulf %43, %63 : vector<2x4x256xf32>
    %65 = arith.mulf %49, %62 : vector<1x4x1xf32>
    %66 = arith.subf %10, %65 : vector<1x4x1xf32>
    %67 = vector.broadcast %66 : vector<1x4x1xf32> to vector<2x4x256xf32>
    %68 = arith.addf %64, %67 : vector<2x4x256xf32>
    %cst_23 = arith.constant 0.000000e+00 : f32
    %69 = vector.broadcast %cst_23 : f32 to vector<2x4x256xf32>
    %70 = arith.maximumf %68, %69 : vector<2x4x256xf32>
    %71 = vector.extract_strided_slice %4 {offsets = [0, 0], sizes = [4, 1], strides = [1, 1]} : vector<4x4xf32> to vector<4x1xf32>
    %72 = vector.shape_cast %71 : vector<4x1xf32> to vector<1x4x1xf32>
    %73 = vector.extract_strided_slice %70 {offsets = [0, 0, 0], sizes = [2, 1, 256], strides = [1, 1, 1]} : vector<2x4x256xf32> to vector<2x1x256xf32>
    %74 = vector.broadcast %72 : vector<1x4x1xf32> to vector<2x4x256xf32>
    %75 = vector.broadcast %73 : vector<2x1x256xf32> to vector<2x4x256xf32>
    %76 = arith.mulf %74, %75 : vector<2x4x256xf32>
    %77 = vector.extract_strided_slice %4 {offsets = [0, 1], sizes = [4, 1], strides = [1, 1]} : vector<4x4xf32> to vector<4x1xf32>
    %78 = vector.shape_cast %77 : vector<4x1xf32> to vector<1x4x1xf32>
    %79 = vector.extract_strided_slice %70 {offsets = [0, 1, 0], sizes = [2, 1, 256], strides = [1, 1, 1]} : vector<2x4x256xf32> to vector<2x1x256xf32>
    %80 = vector.broadcast %78 : vector<1x4x1xf32> to vector<2x4x256xf32>
    %81 = vector.broadcast %79 : vector<2x1x256xf32> to vector<2x4x256xf32>
    %82 = arith.mulf %80, %81 : vector<2x4x256xf32>
    %83 = arith.addf %76, %82 : vector<2x4x256xf32>
    %84 = vector.extract_strided_slice %4 {offsets = [0, 2], sizes = [4, 1], strides = [1, 1]} : vector<4x4xf32> to vector<4x1xf32>
    %85 = vector.shape_cast %84 : vector<4x1xf32> to vector<1x4x1xf32>
    %86 = vector.extract_strided_slice %70 {offsets = [0, 2, 0], sizes = [2, 1, 256], strides = [1, 1, 1]} : vector<2x4x256xf32> to vector<2x1x256xf32>
    %87 = vector.broadcast %85 : vector<1x4x1xf32> to vector<2x4x256xf32>
    %88 = vector.broadcast %86 : vector<2x1x256xf32> to vector<2x4x256xf32>
    %89 = arith.mulf %87, %88 : vector<2x4x256xf32>
    %90 = arith.addf %83, %89 : vector<2x4x256xf32>
    %91 = vector.extract_strided_slice %4 {offsets = [0, 3], sizes = [4, 1], strides = [1, 1]} : vector<4x4xf32> to vector<4x1xf32>
    %92 = vector.shape_cast %91 : vector<4x1xf32> to vector<1x4x1xf32>
    %93 = vector.extract_strided_slice %70 {offsets = [0, 3, 0], sizes = [2, 1, 256], strides = [1, 1, 1]} : vector<2x4x256xf32> to vector<2x1x256xf32>
    %94 = vector.broadcast %92 : vector<1x4x1xf32> to vector<2x4x256xf32>
    %95 = vector.broadcast %93 : vector<2x1x256xf32> to vector<2x4x256xf32>
    %96 = arith.mulf %94, %95 : vector<2x4x256xf32>
    %97 = arith.addf %90, %96 : vector<2x4x256xf32>
    %cst_24 = arith.constant dense<0.000000e+00> : vector<2x4xf32>
    %98 = vector.multi_reduction <add>, %97, %cst_24 [2] : vector<2x4x256xf32> to vector<2x4xf32>
    %99 = vector.shape_cast %98 : vector<2x4xf32> to vector<2x4x1xf32>
    %cst_25 = arith.constant dense<0.000000e+00> : vector<4x1xf32>
    %100 = vector.multi_reduction <add>, %99, %cst_25 [0] : vector<2x4x1xf32> to vector<4x1xf32>
    %101 = vector.shape_cast %100 : vector<4x1xf32> to vector<1x4x1xf32>
    %cst_26 = arith.constant 0.001953125 : f32
    %102 = vector.broadcast %cst_26 : f32 to vector<1x4x1xf32>
    %103 = arith.mulf %101, %102 : vector<1x4x1xf32>
    %104 = vector.broadcast %103 : vector<1x4x1xf32> to vector<2x4x256xf32>
    %105 = arith.subf %97, %104 : vector<2x4x256xf32>
    %106 = arith.mulf %105, %105 : vector<2x4x256xf32>
    %cst_27 = arith.constant dense<0.000000e+00> : vector<2x4xf32>
    %107 = vector.multi_reduction <add>, %106, %cst_27 [2] : vector<2x4x256xf32> to vector<2x4xf32>
    %108 = vector.shape_cast %107 : vector<2x4xf32> to vector<2x4x1xf32>
    %cst_28 = arith.constant dense<0.000000e+00> : vector<4x1xf32>
    %109 = vector.multi_reduction <add>, %108, %cst_28 [0] : vector<2x4x1xf32> to vector<4x1xf32>
    %110 = vector.shape_cast %109 : vector<4x1xf32> to vector<1x4x1xf32>
    %cst_29 = arith.constant 0.001953125 : f32
    %111 = vector.broadcast %cst_29 : f32 to vector<1x4x1xf32>
    %112 = arith.mulf %110, %111 : vector<1x4x1xf32>
    %cst_30 = arith.constant 9.99999974E-6 : f32
    %113 = vector.broadcast %cst_30 : f32 to vector<1x4x1xf32>
    %114 = arith.addf %112, %113 : vector<1x4x1xf32>
    %115 = math.rsqrt %114 : vector<1x4x1xf32>
    %116 = arith.mulf %13, %115 : vector<1x4x1xf32>
    %117 = vector.broadcast %116 : vector<1x4x1xf32> to vector<2x4x256xf32>
    %118 = arith.mulf %97, %117 : vector<2x4x256xf32>
    %119 = arith.mulf %103, %116 : vector<1x4x1xf32>
    %120 = arith.subf %16, %119 : vector<1x4x1xf32>
    %121 = vector.broadcast %120 : vector<1x4x1xf32> to vector<2x4x256xf32>
    %122 = arith.addf %118, %121 : vector<2x4x256xf32>
    %123 = arith.addf %122, %0 : vector<2x4x256xf32>
    %c0_31 = arith.constant 0 : index
    %c0_32 = arith.constant 0 : index
    %c0_33 = arith.constant 0 : index
    %124 = vector.load %arg3[%c0_31, %c0_32, %c0_33] : memref<2x4x256xf32, #tpu.memory_space<vmem>>, vector<2x4x256xf32>
    tpu.vector_store %arg3[%c0_31, %c0_32, %c0_33], %123 {strides = array<i32>} : memref<2x4x256xf32, #tpu.memory_space<vmem>>, vector<2x4x256xf32>,
    return
  }
}

</mosaic_0001>

<llo_original>
// kernel: resnet_block.1
$region0: #{resnet_block.1}
  #allocation0 [shape = 'u32[]', space=smem, size = 0x4, offset = 0x4, fixed_abs, tag = 'smem constant byte address 0x4 - core index']
  #allocation1 [shape = 'u32[144,128]{1,0:T(1,128)}', space=vmem, size = 0x12000, scoped, tag = 'internal scratch']
  %s0 = inlined_call_operand.vmem [shape: f32[2,4,256], index: 0, kind: input, shape index: {}]
  %s1 = inlined_call_operand.vmem [shape: f32[2,4,4], index: 1, kind: input, shape index: {}]
  %s2 = inlined_call_operand.vmem [shape: f32[4,4,1], index: 2, kind: input, shape index: {}]
  %s3 = inlined_call_operand.vmem [shape: f32[2,4,256], index: 3, kind: output, shape index: {}]
  %s4 = sld [smem:[#allocation0]]
  $region22: #{resnet_block.1} parent=0
    _
  %s6 = ssub.s32 1, %s4
  %s7 = scalar_select 0, %s6, %s4
  // Predicated region
  $region2: #{resnet_block.1} parent=0 // pred_check
    _
  $region3: #{resnet_block.1} parent=0 // pred_check_branch
    %9 = sbr.rel (0) target = $region5
  $region4: #{resnet_block.1} parent=0 // pred_region
    _
  $region5: #{resnet_block.1} parent=0 // pred_fallthru
    _
  // Predicated region
  $region6: #{resnet_block.1} parent=0 // pred_check
    _
  $region7: #{resnet_block.1} parent=0 // pred_check_branch
    %11 = sbr.rel (0) target = $region9
  $region8: #{resnet_block.1} parent=0 // pred_region
    _
  $region9: #{resnet_block.1} parent=0 // pred_fallthru
    _
  // Predicated region
  $region10: #{resnet_block.1} parent=0 // pred_check
    _
  $region11: #{resnet_block.1} parent=0 // pred_check_branch
    %13 = sbr.rel (0) target = $region13
  $region12: #{resnet_block.1} parent=0 // pred_region
    _
  $region13: #{resnet_block.1} parent=0 // pred_fallthru
    _
  %v14 = vld [vmem:[%s0] sm:$0xff]
  %v15 = vld [vmem:[%s0 + $0x8] sm:$0xff]
  %v16 = vld [vmem:[%s1] sm:$0xf]
  %s17 = scalar_lea.vmem %s1, 4
  %v18 = vld [vmem:[%s17] sm:$0xf]
  %v19 = vld [vmem:[%s2] sm:$0xf]
  %s20 = scalar_lea.vmem %s2, 4
  %v21 = vld [vmem:[%s20] sm:$0xf]
  %s22 = scalar_lea.vmem %s2, 8
  %v23 = vld [vmem:[%s22] sm:$0xf]
  %s24 = scalar_lea.vmem %s2, 12
  %v25 = vld [vmem:[%s24] sm:$0xf]
  %27 = vset.pattern.permute.xlu0 0
  %28 = vperm.xlu0 %27, %v16
  %v29 = vpop.permute.xlu0 %28
  %v33 = vlaneseq
  %v34 = vshrl.u32 %v33, 7
  %v35 = vsub.s32 0, %v34
  %v36 = vrot.slane %v14, %v35
  %v37 = vlaneseq
  %v38 = vshrl.u32 %v37, 7
  %v39 = vsub.s32 4, %v38
  %v40 = vrot.slane %v14, %v39
  %v41 = vlaneseq
  %v42 = vshrl.u32 %v41, 7
  %v43 = vsub.s32 0, %v42
  %v44 = vrot.slane %v15, %v43
  %v45 = vlaneseq
  %v46 = vshrl.u32 %v45, 7
  %v47 = vsub.s32 4, %v46
  %v48 = vrot.slane %v15, %v47
  %v53 = vlaneseq
  %v54 = vshrl.u32 %v53, 7
  %v55 = vsub.s32 0, %v54
  %v56 = vrot.slane %v36, %v55
  %v57 = vlaneseq
  %v58 = vshrl.u32 %v57, 7
  %v59 = vsub.s32 0, %v58
  %v60 = vrot.slane %v40, %v59
  %v61 = vlaneseq
  %v62 = vshrl.u32 %v61, 7
  %v63 = vsub.s32 0, %v62
  %v64 = vrot.slane %v44, %v63
  %v65 = vlaneseq
  %v66 = vshrl.u32 %v65, 7
  %v67 = vsub.s32 0, %v66
  %v68 = vrot.slane %v48, %v67
  %v69 = vmul.f32 %v29, %v56
  %v70 = vmul.f32 %v29, %v60
  %v71 = vmul.f32 %v29, %v64
  %v72 = vmul.f32 %v29, %v68
  %73 = vset.pattern.permute.xlu0 1
  %74 = vperm.xlu0 %73, %v16
  %v75 = vpop.permute.xlu0 %74
  %v77 = vlaneseq
  %v78 = vshrl.u32 %v77, 7
  %v79 = vsub.s32 1, %v78
  %v80 = vrot.slane %v14, %v79
  %v81 = vlaneseq
  %v82 = vshrl.u32 %v81, 7
  %v83 = vsub.s32 5, %v82
  %v84 = vrot.slane %v14, %v83
  %v85 = vlaneseq
  %v86 = vshrl.u32 %v85, 7
  %v87 = vsub.s32 1, %v86
  %v88 = vrot.slane %v15, %v87
  %v89 = vlaneseq
  %v90 = vshrl.u32 %v89, 7
  %v91 = vsub.s32 5, %v90
  %v92 = vrot.slane %v15, %v91
  %v97 = vlaneseq
  %v98 = vshrl.u32 %v97, 7
  %v99 = vsub.s32 1, %v98
  %v100 = vrot.slane %v80, %v99
  %v101 = vlaneseq
  %v102 = vshrl.u32 %v101, 7
  %v103 = vsub.s32 1, %v102
  %v104 = vrot.slane %v84, %v103
  %v105 = vlaneseq
  %v106 = vshrl.u32 %v105, 7
  %v107 = vsub.s32 1, %v106
  %v108 = vrot.slane %v88, %v107
  %v109 = vlaneseq
  %v110 = vshrl.u32 %v109, 7
  %v111 = vsub.s32 1, %v110
  %v112 = vrot.slane %v92, %v111
  %v113 = vmul.f32 %v75, %v100
  %v114 = vmul.f32 %v75, %v104
  %v115 = vmul.f32 %v75, %v108
  %v116 = vmul.f32 %v75, %v112
  %v117 = vadd.f32 %v69, %v113
  %v118 = vadd.f32 %v70, %v114
  %v119 = vadd.f32 %v71, %v115
  %v120 = vadd.f32 %v72, %v116
  %121 = vset.pattern.permute.xlu0 2
  %122 = vperm.xlu0 %121, %v16
  %v123 = vpop.permute.xlu0 %122
  %v125 = vlaneseq
  %v126 = vshrl.u32 %v125, 7
  %v127 = vsub.s32 2, %v126
  %v128 = vrot.slane %v14, %v127
  %v129 = vlaneseq
  %v130 = vshrl.u32 %v129, 7
  %v131 = vsub.s32 6, %v130
  %v132 = vrot.slane %v14, %v131
  %v133 = vlaneseq
  %v134 = vshrl.u32 %v133, 7
  %v135 = vsub.s32 2, %v134
  %v136 = vrot.slane %v15, %v135
  %v137 = vlaneseq
  %v138 = vshrl.u32 %v137, 7
  %v139 = vsub.s32 6, %v138
  %v140 = vrot.slane %v15, %v139
  %v145 = vlaneseq
  %v146 = vshrl.u32 %v145, 7
  %v147 = vsub.s32 2, %v146
  %v148 = vrot.slane %v128, %v147
  %v149 = vlaneseq
  %v150 = vshrl.u32 %v149, 7
  %v151 = vsub.s32 2, %v150
  %v152 = vrot.slane %v132, %v151
  %v153 = vlaneseq
  %v154 = vshrl.u32 %v153, 7
  %v155 = vsub.s32 2, %v154
  %v156 = vrot.slane %v136, %v155
  %v157 = vlaneseq
  %v158 = vshrl.u32 %v157, 7
  %v159 = vsub.s32 2, %v158
  %v160 = vrot.slane %v140, %v159
  %v161 = vmul.f32 %v123, %v148
  %v162 = vmul.f32 %v123, %v152
  %v163 = vmul.f32 %v123, %v156
  %v164 = vmul.f32 %v123, %v160
  %v165 = vadd.f32 %v117, %v161
  %v166 = vadd.f32 %v118, %v162
  %v167 = vadd.f32 %v119, %v163
  %v168 = vadd.f32 %v120, %v164
  %169 = vset.pattern.permute.xlu0 3
  %170 = vperm.xlu0 %169, %v16
  %v171 = vpop.permute.xlu0 %170
  %v173 = vlaneseq
  %v174 = vshrl.u32 %v173, 7
  %v175 = vsub.s32 3, %v174
  %v176 = vrot.slane %v14, %v175
  %v177 = vlaneseq
  %v178 = vshrl.u32 %v177, 7
  %v179 = vsub.s32 7, %v178
  %v180 = vrot.slane %v14, %v179
  %v181 = vlaneseq
  %v182 = vshrl.u32 %v181, 7
  %v183 = vsub.s32 3, %v182
  %v184 = vrot.slane %v15, %v183
  %v185 = vlaneseq
  %v186 = vshrl.u32 %v185, 7
  %v187 = vsub.s32 7, %v186
  %v188 = vrot.slane %v15, %v187
  %v193 = vlaneseq
  %v194 = vshrl.u32 %v193, 7
  %v195 = vsub.s32 3, %v194
  %v196 = vrot.slane %v176, %v195
  %v197 = vlaneseq
  %v198 = vshrl.u32 %v197, 7
  %v199 = vsub.s32 3, %v198
  %v200 = vrot.slane %v180, %v199
  %v201 = vlaneseq
  %v202 = vshrl.u32 %v201, 7
  %v203 = vsub.s32 3, %v202
  %v204 = vrot.slane %v184, %v203
  %v205 = vlaneseq
  %v206 = vshrl.u32 %v205, 7
  %v207 = vsub.s32 3, %v206
  %v208 = vrot.slane %v188, %v207
  %v209 = vmul.f32 %v171, %v196
  %v210 = vmul.f32 %v171, %v200
  %v211 = vmul.f32 %v171, %v204
  %v212 = vmul.f32 %v171, %v208
  %v213 = vadd.f32 %v165, %v209
  %v214 = vadd.f32 %v166, %v210
  %v215 = vadd.f32 %v167, %v211
  %v216 = vadd.f32 %v168, %v212
  %vm217 = vcmask 1043456
  %v218 = vsel %vm217, %v213, 0.0
  %v219 = vsel %vm217, %v214, 0.0
  %v220 = vadd.f32 %v218, %v219
  %221 = vadd.xlane.f32.xlu0 %v220
  %v222 = vpop.xlane.xlu0 %221
  %v223 = vsel %vm217, %v215, 0.0
  %v224 = vsel %vm217, %v216, 0.0
  %v225 = vadd.f32 %v223, %v224
  %226 = vadd.xlane.f32.xlu0 %v225
  %v227 = vpop.xlane.xlu0 %226
  %v228 = vsel %vm217, %v222, 0.0
  %v229 = vsel %vm217, %v227, 0.0
  %v230 = vadd.f32 %v228, %v229
  %v231 = vmul.f32 %v230, 0.001953125
  %v232 = vsub.f32 %v213, %v231
  %v233 = vsub.f32 %v214, %v231
  %v234 = vsub.f32 %v215, %v231
  %v235 = vsub.f32 %v216, %v231
  %v236 = vmul.f32 %v232, %v232
  %v237 = vmul.f32 %v233, %v233
  %v238 = vmul.f32 %v234, %v234
  %v239 = vmul.f32 %v235, %v235
  %v240 = vsel %vm217, %v236, 0.0
  %v241 = vsel %vm217, %v237, 0.0
  %v242 = vadd.f32 %v240, %v241
  %243 = vadd.xlane.f32.xlu0 %v242
  %v244 = vpop.xlane.xlu0 %243
  %v245 = vsel %vm217, %v238, 0.0
  %v246 = vsel %vm217, %v239, 0.0
  %v247 = vadd.f32 %v245, %v246
  %248 = vadd.xlane.f32.xlu0 %v247
  %v249 = vpop.xlane.xlu0 %248
  %v250 = vsel %vm217, %v244, 0.0
  %v251 = vsel %vm217, %v249, 0.0
  %v252 = vadd.f32 %v250, %v251
  %v253 = vmul.f32 %v252, 0.001953125
  %v254 = vadd.f32 %v253, 1e-05
  %v255 = vrsqrt.pop %v254
  %v256 = vmul.f32 %v19, %v255
  %258 = vset.pattern.permute.xlu0 0
  %259 = vperm.xlu0 %258, %v256
  %v260 = vpop.permute.xlu0 %259
  %v262 = vmul.f32 %v213, %v260
  %v263 = vmul.f32 %v214, %v260
  %v264 = vmul.f32 %v215, %v260
  %v265 = vmul.f32 %v216, %v260
  %v266 = vmul.f32 %v231, %v256
  %v267 = vsub.f32 %v21, %v266
  %269 = vset.pattern.permute.xlu0 0
  %270 = vperm.xlu0 %269, %v267
  %v271 = vpop.permute.xlu0 %270
  %v273 = vadd.f32 %v262, %v271
  %v274 = vadd.f32 %v263, %v271
  %v275 = vadd.f32 %v264, %v271
  %v276 = vadd.f32 %v265, %v271
  %v277 = vmax.f32 %v273, 0.0
  %v278 = vmax.f32 %v274, 0.0
  %v279 = vmax.f32 %v275, 0.0
  %v280 = vmax.f32 %v276, 0.0
  %282 = vset.pattern.permute.xlu0 0
  %283 = vperm.xlu0 %282, %v18
  %v284 = vpop.permute.xlu0 %283
  %v286 = vlaneseq
  %v287 = vshrl.u32 %v286, 7
  %v288 = vsub.s32 0, %v287
  %v289 = vrot.slane %v277, %v288
  %v290 = vlaneseq
  %v291 = vshrl.u32 %v290, 7
  %v292 = vsub.s32 0, %v291
  %v293 = vrot.slane %v278, %v292
  %v294 = vlaneseq
  %v295 = vshrl.u32 %v294, 7
  %v296 = vsub.s32 0, %v295
  %v297 = vrot.slane %v279, %v296
  %v298 = vlaneseq
  %v299 = vshrl.u32 %v298, 7
  %v300 = vsub.s32 0, %v299
  %v301 = vrot.slane %v280, %v300
  %v302 = vmul.f32 %v284, %v289
  %v303 = vmul.f32 %v284, %v293
  %v304 = vmul.f32 %v284, %v297
  %v305 = vmul.f32 %v284, %v301
  %306 = vset.pattern.permute.xlu0 1
  %307 = vperm.xlu0 %306, %v18
  %v308 = vpop.permute.xlu0 %307
  %v310 = vlaneseq
  %v311 = vshrl.u32 %v310, 7
  %v312 = vsub.s32 1, %v311
  %v313 = vrot.slane %v277, %v312
  %v314 = vlaneseq
  %v315 = vshrl.u32 %v314, 7
  %v316 = vsub.s32 1, %v315
  %v317 = vrot.slane %v278, %v316
  %v318 = vlaneseq
  %v319 = vshrl.u32 %v318, 7
  %v320 = vsub.s32 1, %v319
  %v321 = vrot.slane %v279, %v320
  %v322 = vlaneseq
  %v323 = vshrl.u32 %v322, 7
  %v324 = vsub.s32 1, %v323
  %v325 = vrot.slane %v280, %v324
  %v326 = vmul.f32 %v308, %v313
  %v327 = vmul.f32 %v308, %v317
  %v328 = vmul.f32 %v308, %v321
  %v329 = vmul.f32 %v308, %v325
  %v330 = vadd.f32 %v302, %v326
  %v331 = vadd.f32 %v303, %v327
  %v332 = vadd.f32 %v304, %v328
  %v333 = vadd.f32 %v305, %v329
  %334 = vset.pattern.permute.xlu0 2
  %335 = vperm.xlu0 %334, %v18
  %v336 = vpop.permute.xlu0 %335
  %v338 = vlaneseq
  %v339 = vshrl.u32 %v338, 7
  %v340 = vsub.s32 2, %v339
  %v341 = vrot.slane %v277, %v340
  %v342 = vlaneseq
  %v343 = vshrl.u32 %v342, 7
  %v344 = vsub.s32 2, %v343
  %v345 = vrot.slane %v278, %v344
  %v346 = vlaneseq
  %v347 = vshrl.u32 %v346, 7
  %v348 = vsub.s32 2, %v347
  %v349 = vrot.slane %v279, %v348
  %v350 = vlaneseq
  %v351 = vshrl.u32 %v350, 7
  %v352 = vsub.s32 2, %v351
  %v353 = vrot.slane %v280, %v352
  %v354 = vmul.f32 %v336, %v341
  %v355 = vmul.f32 %v336, %v345
  %v356 = vmul.f32 %v336, %v349
  %v357 = vmul.f32 %v336, %v353
  %v358 = vadd.f32 %v330, %v354
  %v359 = vadd.f32 %v331, %v355
  %v360 = vadd.f32 %v332, %v356
  %v361 = vadd.f32 %v333, %v357
  %362 = vset.pattern.permute.xlu0 3
  %363 = vperm.xlu0 %362, %v18
  %v364 = vpop.permute.xlu0 %363
  %v366 = vlaneseq
  %v367 = vshrl.u32 %v366, 7
  %v368 = vsub.s32 3, %v367
  %v369 = vrot.slane %v277, %v368
  %v370 = vlaneseq
  %v371 = vshrl.u32 %v370, 7
  %v372 = vsub.s32 3, %v371
  %v373 = vrot.slane %v278, %v372
  %v374 = vlaneseq
  %v375 = vshrl.u32 %v374, 7
  %v376 = vsub.s32 3, %v375
  %v377 = vrot.slane %v279, %v376
  %v378 = vlaneseq
  %v379 = vshrl.u32 %v378, 7
  %v380 = vsub.s32 3, %v379
  %v381 = vrot.slane %v280, %v380
  %v382 = vmul.f32 %v364, %v369
  %v383 = vmul.f32 %v364, %v373
  %v384 = vmul.f32 %v364, %v377
  %v385 = vmul.f32 %v364, %v381
  %v386 = vadd.f32 %v358, %v382
  %v387 = vadd.f32 %v359, %v383
  %v388 = vadd.f32 %v360, %v384
  %v389 = vadd.f32 %v361, %v385
  %v390 = vsel %vm217, %v386, 0.0
  %v391 = vsel %vm217, %v387, 0.0
  %v392 = vadd.f32 %v390, %v391
  %393 = vadd.xlane.f32.xlu0 %v392
  %v394 = vpop.xlane.xlu0 %393
  %v395 = vsel %vm217, %v388, 0.0
  %v396 = vsel %vm217, %v389, 0.0
  %v397 = vadd.f32 %v395, %v396
  %398 = vadd.xlane.f32.xlu0 %v397
  %v399 = vpop.xlane.xlu0 %398
  %v400 = vsel %vm217, %v394, 0.0
  %v401 = vsel %vm217, %v399, 0.0
  %v402 = vadd.f32 %v400, %v401
  %v403 = vmul.f32 %v402, 0.001953125
  %v404 = vsub.f32 %v386, %v403
  %v405 = vsub.f32 %v387, %v403
  %v406 = vsub.f32 %v388, %v403
  %v407 = vsub.f32 %v389, %v403
  %v408 = vmul.f32 %v404, %v404
  %v409 = vmul.f32 %v405, %v405
  %v410 = vmul.f32 %v406, %v406
  %v411 = vmul.f32 %v407, %v407
  %v412 = vsel %vm217, %v408, 0.0
  %v413 = vsel %vm217, %v409, 0.0
  %v414 = vadd.f32 %v412, %v413
  %415 = vadd.xlane.f32.xlu0 %v414
  %v416 = vpop.xlane.xlu0 %415
  %v417 = vsel %vm217, %v410, 0.0
  %v418 = vsel %vm217, %v411, 0.0
  %v419 = vadd.f32 %v417, %v418
  %420 = vadd.xlane.f32.xlu0 %v419
  %v421 = vpop.xlane.xlu0 %420
  %v422 = vsel %vm217, %v416, 0.0
  %v423 = vsel %vm217, %v421, 0.0
  %v424 = vadd.f32 %v422, %v423
  %v425 = vmul.f32 %v424, 0.001953125
  %v426 = vadd.f32 %v425, 1e-05
  %v427 = vrsqrt.pop %v426
  %v428 = vmul.f32 %v23, %v427
  %430 = vset.pattern.permute.xlu0 0
  %431 = vperm.xlu0 %430, %v428
  %v432 = vpop.permute.xlu0 %431
  %v434 = vmul.f32 %v386, %v432
  %v435 = vmul.f32 %v387, %v432
  %v436 = vmul.f32 %v388, %v432
  %v437 = vmul.f32 %v389, %v432
  %v438 = vmul.f32 %v403, %v428
  %v439 = vsub.f32 %v25, %v438
  %441 = vset.pattern.permute.xlu0 0
  %442 = vperm.xlu0 %441, %v439
  %v443 = vpop.permute.xlu0 %442
  %v445 = vadd.f32 %v434, %v443
  %v446 = vadd.f32 %v435, %v443
  %v447 = vadd.f32 %v436, %v443
  %v448 = vadd.f32 %v437, %v443
  %v449 = vcombine.high %v14, %v14
  %v450 = vcombine.high %v15, %v15
  %v453 = vadd.f32 %v445, %v14
  %v454 = vadd.f32 %v446, %v449
  %v455 = vadd.f32 %v447, %v15
  %v456 = vadd.f32 %v448, %v450
  %v461 = vcombine.low %v453, %v454
  %v462 = vcombine.low %v455, %v456
  %465 = vst [vmem:[%s3] sm:$0xff] %v461
  %466 = vst [vmem:[%s3 + $0x8] sm:$0xff] %v462
  // Predicated region
  $region14: #{resnet_block.1} parent=0 // pred_check
    _
  $region15: #{resnet_block.1} parent=0 // pred_check_branch
    %468 = sbr.rel (0) target = $region17
  $region16: #{resnet_block.1} parent=0 // pred_region
    _
  $region17: #{resnet_block.1} parent=0 // pred_fallthru
    _
  // Predicated region
  $region18: #{resnet_block.1} parent=0 // pred_check
    _
  $region19: #{resnet_block.1} parent=0 // pred_check_branch
    %470 = sbr.rel (0) target = $region21
  $region20: #{resnet_block.1} parent=0 // pred_region
    _
  $region21: #{resnet_block.1} parent=0 // pred_fallthru
    _

</llo_original>
